<compile_context>
chip_gen: v7x
topology: tpu7x:2x2x1
jax: 0.10.0
libtpu: 0.0.40
codegen_flags: <defaults>
</compile_context>

<pallas_src>
import jax
import jax.numpy as jnp
from jax.experimental import pallas as pl
from jax.experimental.pallas import tpu as pltpu


_VMEM_LIMIT_BYTES = 48 * 1024 * 1024    # scoped-VMEM request: safe on v5e/v6e/v7x
_BLOCK_BUDGET_BYTES = 36 * 1024 * 1024  # double-buffered in+out blocks stay under this


def _round_up8(n):
    return ((n + 7) // 8) * 8


def _choose_tile_rows(rows, in_row_bytes, out_row_bytes, *, min_tiles=4):
    """Rows per grid step, derived from the VMEM budget (not a fixed row cap)."""
    per_row = 2 * (in_row_bytes + out_row_bytes)          # x2 for double buffering
    tm = max(8, ((_BLOCK_BUDGET_BYTES // per_row) // 8) * 8)
    # Keep at least `min_tiles` grid steps when the batch is big enough, so the
    # "parallel" batch axis can actually be split across v7x's two TensorCores.
    if rows >= min_tiles * 8:
        tm = min(tm, _round_up8(-(-rows // min_tiles)))
    if tm >= rows:
        return rows                                       # single full-extent block
    return tm


def _fold_kernel(x_ref, wblk_ref, b_ref, o_ref):
    # x_ref: (TM, 128) VMEM, wblk_ref: (128, R) VMEM, b_ref: (1,) SMEM, o_ref: (TM, R)
    y = jnp.dot(x_ref[...], wblk_ref[...], preferred_element_type=jnp.float32)
    o_ref[...] = (y + b_ref[0]).astype(o_ref.dtype)


def _rowreduce_kernel(x_ref, w_ref, b_ref, o_ref):
    # x_ref: (TM, D) VMEM, w_ref: (1, D) VMEM, b_ref: (1,) SMEM, o_ref: (TM, 1)
    y = jnp.sum(x_ref[...] * w_ref[...], axis=-1, keepdims=True)   # VPU mul + lane reduce
    o_ref[...] = (y + b_ref[0]).astype(o_ref.dtype)


def linear_regression_forward(x, weight, bias):
    """x: (B, D) f32, weight: (1, D) f32, bias: (1,) f32 -> (B, 1) f32."""
    B, D = x.shape
    itemsize = jnp.dtype(x.dtype).itemsize
    bias = bias.astype(x.dtype)
    weight = weight.astype(x.dtype)

    compiler_params = pltpu.CompilerParams(
        dimension_semantics=("parallel",),       # independent batch tiles; v7x 2-TC split
        vmem_limit_bytes=_VMEM_LIMIT_BYTES,
    )
    cost = pl.CostEstimate(
        flops=2 * B * D,
        transcendentals=0,
        bytes_accessed=B * D * itemsize + D * itemsize + (B + 1) * itemsize,
    )

    can_fold = (B > 0) and (D < 128) and (128 % D == 0) and (B % (128 // D) == 0)

    if can_fold:
        # ---- Folded path: R samples per kernel row, full-lane x loads. ----
        R = 128 // D
        B2 = B // R
        x2 = x.reshape(B2, 128)                               # free contiguous reshape
        # Block-diagonal weights: W_blk[r*D + d, r] = w[d]  -> (128, R)
        w_blk = jnp.kron(jnp.eye(R, dtype=x.dtype), weight.reshape(D, 1))

        tm = _choose_tile_rows(B2, in_row_bytes=128 * itemsize,
                               out_row_bytes=128 * itemsize)   # out block lane-padded
        num_tiles = pl.cdiv(B2, tm)

        grid_spec = pl.GridSpec(
            grid=(num_tiles,),
            in_specs=[
                pl.BlockSpec((tm, 128), lambda i: (i, 0)),                 # x tiles
                pl.BlockSpec((128, R), lambda i: (0, 0)),                  # W_blk, resident
                pl.BlockSpec(memory_space=pltpu.MemorySpace.SMEM),         # bias scalar
            ],
            out_specs=pl.BlockSpec((tm, R), lambda i: (i, 0)),
        )
        out = pl.pallas_call(
            _fold_kernel,
            out_shape=jax.ShapeDtypeStruct((B2, R), x.dtype),
            grid_spec=grid_spec,
            compiler_params=compiler_params,
            cost_estimate=cost,
        )(x2, w_blk, bias)
        return out.reshape(B, 1)                              # free contiguous reshape

    # ---- General path: per-row VPU multiply-reduce (any B, D). ----
    lane_padded = ((D + 127) // 128) * 128
    tm = _choose_tile_rows(B, in_row_bytes=lane_padded * itemsize,
                           out_row_bytes=128 * itemsize)
    num_tiles = pl.cdiv(B, tm)

    grid_spec = pl.GridSpec(
        grid=(num_tiles,),
        in_specs=[
            pl.BlockSpec((tm, D), lambda i: (i, 0)),                       # x tiles
            pl.BlockSpec((1, D), lambda i: (0, 0)),                        # weight, resident
            pl.BlockSpec(memory_space=pltpu.MemorySpace.SMEM),             # bias scalar
        ],
        out_specs=pl.BlockSpec((tm, 1), lambda i: (i, 0)),
    )
    out = pl.pallas_call(
        _rowreduce_kernel,
        out_shape=jax.ShapeDtypeStruct((B, 1), x.dtype),
        grid_spec=grid_spec,
        compiler_params=compiler_params,
        cost_estimate=cost,
    )(x, weight, bias)
    return out


if __name__ == "__main__":
    key = jax.random.PRNGKey(0)
    kx, kw, kb, kx2 = jax.random.split(key, 4)

    # Shapes consistent with the module: nn.Linear(input_dim, 1)
    batch, input_dim = 8, 16
    x = jax.random.normal(kx, (batch, input_dim), dtype=jnp.float32)
    weight = jax.random.normal(kw, (1, input_dim), dtype=jnp.float32) * 0.1
    bias = jax.random.normal(kb, (1,), dtype=jnp.float32) * 0.1

    # Folded (lane-dense) path
    y = jax.block_until_ready(linear_regression_forward(x, weight, bias))
    y_ref = x @ weight.T + bias
    assert y.shape == (batch, 1)
    assert jnp.allclose(y, y_ref, atol=1e-5, rtol=1e-5)

    # General fallback path (D does not divide 128)
    b2, d2 = 10, 20
    x_b = jax.random.normal(kx2, (b2, d2), dtype=jnp.float32)
    w_b = jax.random.normal(kw, (1, d2), dtype=jnp.float32) * 0.1
    y_b = jax.block_until_ready(linear_regression_forward(x_b, w_b, bias))
    y_b_ref = x_b @ w_b.T + bias
    assert y_b.shape == (b2, 1)
    assert jnp.allclose(y_b, y_b_ref, atol=1e-5, rtol=1e-5)

    print("KERNEL_OK")
</pallas_src>

<mosaic_0001>
module attributes {stable_mosaic.version = 11 : i64} {
  func.func @_fold_kernel(%arg0: i32, %arg1: memref<1x128xf32, #tpu.memory_space<vmem>>, %arg2: memref<128x8xf32, #tpu.memory_space<vmem>>, %arg3: memref<1xf32, #tpu.memory_space<smem>>, %arg4: memref<1x8xf32, #tpu.memory_space<vmem>>) attributes {dimension_semantics = [#tpu.dimension_semantics<parallel>], iteration_bounds = array<i64: 1>, scalar_prefetch = 0 : i64, scratch_operands = 0 : i64, tpu.core_type = #tpu.core_type<tc>, window_params = [{transform_indices = @transform_0, window_bounds = array<i64: 1, 128>}, {pipeline_mode = #tpu.pipeline_mode<synchronous>, transform_indices = @transform_1, window_bounds = array<i64: 128, 8>}, {transform_indices = @transform_2, window_bounds = array<i64: 1>}, {transform_indices = @transform_3, window_bounds = array<i64: 1, 8>}]} {
    %c0 = arith.constant 0 : index
    %c0_0 = arith.constant 0 : index
    %0 = vector.load %arg1[%c0, %c0_0] : memref<1x128xf32, #tpu.memory_space<vmem>>, vector<1x128xf32>
    %c0_1 = arith.constant 0 : index
    %c0_2 = arith.constant 0 : index
    %1 = vector.load %arg2[%c0_1, %c0_2] : memref<128x8xf32, #tpu.memory_space<vmem>>, vector<128x8xf32>
    %cst = arith.constant dense<0.000000e+00> : vector<1x8xf32>
    %2 = tpu.matmul %0, %1, %cst {dimension_numbers = #tpu.dot_dimension_numbers<[1], [0], [0], [1], [0, 0, 1, 1], [], []>} : vector<1x128xf32>, vector<128x8xf32>, vector<1x8xf32> -> vector<1x8xf32>
    %c0_3 = arith.constant 0 : index
    %3 = memref.load %arg3[%c0_3] : memref<1xf32, #tpu.memory_space<smem>>
    %4 = vector.broadcast %3 : f32 to vector<1x8xf32>
    %5 = arith.addf %2, %4 : vector<1x8xf32>
    %c0_4 = arith.constant 0 : index
    %c0_5 = arith.constant 0 : index
    %6 = vector.load %arg4[%c0_4, %c0_5] : memref<1x8xf32, #tpu.memory_space<vmem>>, vector<1x8xf32>
    tpu.vector_store %arg4[%c0_4, %c0_5], %5 {strides = array<i32>} : memref<1x8xf32, #tpu.memory_space<vmem>>, vector<1x8xf32>,
    return
  }
  func.func @transform_0(%arg0: i32) -> (i32, i32) {
    %c0_i32 = arith.constant 0 : i32
    %c0_i32_0 = arith.constant 0 : i32
    return %arg0, %c0_i32 : i32, i32
  }
  func.func @transform_1(%arg0: i32) -> (i32, i32) {
    %c0_i32 = arith.constant 0 : i32
    %c0_i32_0 = arith.constant 0 : i32
    %c0_i32_1 = arith.constant 0 : i32
    return %c0_i32, %c0_i32_0 : i32, i32
  }
  func.func @transform_2(%arg0: i32) -> i32 {
    %c0_i32 = arith.constant 0 : i32
    %c0_i32_0 = arith.constant 0 : i32
    return %c0_i32 : i32
  }
  func.func @transform_3(%arg0: i32) -> (i32, i32) {
    %c0_i32 = arith.constant 0 : i32
    %c0_i32_0 = arith.constant 0 : i32
    return %arg0, %c0_i32 : i32, i32
  }
}

</mosaic_0001>

<llo_original>
// kernel: tpu_custom_call.1
$region0: #{tpu_custom_call.1}
  #allocation0 [shape = 'u32[]', space=smem, size = 0x4, offset = 0x4, fixed_abs, tag = 'smem constant byte address 0x4 - core index']
  #allocation1 [shape = 'u32[144,128]{1,0:T(1,128)}', space=vmem, size = 0x12000, scoped, tag = 'internal scratch']
  #allocation2 [shape = 'f32[1]{0:T(128)S(6)}', space=smem, size = 0x200, scoped, tag = 'scoped memory for tpu_custom_call.1']
  %s0 = inlined_call_operand.vmem [shape: f32[1,128], index: 0, kind: input, shape index: {}]
  %s1 = inlined_call_operand.vmem [shape: f32[128,8], index: 1, kind: input, shape index: {}]
  %s2 = inlined_call_operand.<no memory space> [shape: f32[1], index: 2, kind: input, shape index: {}]
  %s3 = inlined_call_operand.hbm [shape: f32[1,8], index: 3, kind: output, shape index: {}]
  %s4 = sld [smem:[#allocation0]]
  $region22: #{tpu_custom_call.1} parent=0
    _
  %s6 = ssub.s32 1, %s4
  %s7 = scalar_select 0, %s6, %s4
  %8 = sst [smem:[#allocation2]] %s2
  $region1: #{tpu_custom_call.1} parent=0
    #allocation3 [shape = 'u8[512]{0}', space=vmem, size = 0x400, scoped, tag = 'output window, operand 0, single buffered']
    #allocation4 [shape = 's32[1]{0}', space=sflag, size = 0x4, scoped, tag = 'scoped memory for tpu_custom_call.1']
    %9 = vsyncpa [#allocation4], 0
    // Predicated region
    $region2: #{tpu_custom_call.1} parent=1 // pred_check
      _
    $region3: #{tpu_custom_call.1} parent=1 // pred_check_branch
      %11 = sbr.rel (0) target = $region5
    $region4: #{tpu_custom_call.1} parent=1 // pred_region
      _
    $region5: #{tpu_custom_call.1} parent=1 // pred_fallthru
      _
    // Predicated region
    $region6: #{tpu_custom_call.1} parent=1 // pred_check
      _
    $region7: #{tpu_custom_call.1} parent=1 // pred_check_branch
      %13 = sbr.rel (0) target = $region9
    $region8: #{tpu_custom_call.1} parent=1 // pred_region
      _
    $region9: #{tpu_custom_call.1} parent=1 // pred_fallthru
      _
    // Predicated region
    $region10: #{tpu_custom_call.1} parent=1 // pred_check
      _
    $region11: #{tpu_custom_call.1} parent=1 // pred_check_branch
      %15 = sbr.rel (0) target = $region13
    $region12: #{tpu_custom_call.1} parent=1 // pred_region
      _
    $region13: #{tpu_custom_call.1} parent=1 // pred_fallthru
      _
    %v16 = vld [vmem:[%s0] sm:$0x1]
    %v17 = vld [vmem:[%s1] sm:$0xff]
    %v18 = vld [vmem:[%s1 + $0x8] sm:$0xff]
    %v19 = vld [vmem:[%s1 + $0x10] sm:$0xff]
    %v20 = vld [vmem:[%s1 + $0x18] sm:$0xff]
    %v21 = vld [vmem:[%s1 + $0x20] sm:$0xff]
    %v22 = vld [vmem:[%s1 + $0x28] sm:$0xff]
    %v23 = vld [vmem:[%s1 + $0x30] sm:$0xff]
    %v24 = vld [vmem:[%s1 + $0x38] sm:$0xff]
    %v25 = vld [vmem:[%s1 + $0x40] sm:$0xff]
    %v26 = vld [vmem:[%s1 + $0x48] sm:$0xff]
    %v27 = vld [vmem:[%s1 + $0x50] sm:$0xff]
    %v28 = vld [vmem:[%s1 + $0x58] sm:$0xff]
    %v29 = vld [vmem:[%s1 + $0x60] sm:$0xff]
    %v30 = vld [vmem:[%s1 + $0x68] sm:$0xff]
    %v31 = vld [vmem:[%s1 + $0x70] sm:$0xff]
    %v32 = vld [vmem:[%s1 + $0x78] sm:$0xff]
    %s33 = sld [smem:[#allocation2]]
    %v34 = vstv %s33
    %35 = vmatprep.subr.mxu0 0.0
    %36 = vmatpush1.msra.mxu0 %v17
    %37 = vmatprep.subr.mxu0 0.0
    %38 = vmatpush1.msra.mxu0 %v18
    %39 = vmatprep.subr.mxu0 0.0
    %40 = vmatpush1.msra.mxu0 %v19
    %41 = vmatprep.subr.mxu0 0.0
    %42 = vmatpush1.msra.mxu0 %v20
    %43 = vmatprep.subr.mxu0 0.0
    %44 = vmatpush1.msra.mxu0 %v21
    %45 = vmatprep.subr.mxu0 0.0
    %46 = vmatpush1.msra.mxu0 %v22
    %47 = vmatprep.subr.mxu0 0.0
    %48 = vmatpush1.msra.mxu0 %v23
    %49 = vmatprep.subr.mxu0 0.0
    %50 = vmatpush1.msra.mxu0 %v24
    %51 = vmatprep.subr.mxu0 0.0
    %52 = vmatpush1.msra.mxu0 %v25
    %53 = vmatprep.subr.mxu0 0.0
    %54 = vmatpush1.msra.mxu0 %v26
    %55 = vmatprep.subr.mxu0 0.0
    %56 = vmatpush1.msra.mxu0 %v27
    %57 = vmatprep.subr.mxu0 0.0
    %58 = vmatpush1.msra.mxu0 %v28
    %59 = vmatprep.subr.mxu0 0.0
    %60 = vmatpush1.msra.mxu0 %v29
    %61 = vmatprep.subr.mxu0 0.0
    %62 = vmatpush1.msra.mxu0 %v30
    %63 = vmatprep.subr.mxu0 0.0
    %64 = vmatpush1.msra.mxu0 %v31
    %65 = vmatprep.subr.mxu0 0.0
    %66 = vmatpush1.msra.mxu0 %v32
    %67 = vmatprep.subr.mxu0 0.0
    %68 = vmatpush1.msra.mxu0 0.0
    %69 = vmatprep.subr.mxu0 0.0
    %70 = vmatpush1.msra.mxu0 0.0
    %71 = vmatprep.subr.mxu0 0.0
    %72 = vmatpush1.msra.mxu0 0.0
    %73 = vmatprep.subr.mxu0 0.0
    %74 = vmatpush1.msra.mxu0 0.0
    %75 = vmatprep.subr.mxu0 0.0
    %76 = vmatpush1.msra.mxu0 0.0
    %77 = vmatprep.subr.mxu0 0.0
    %78 = vmatpush1.msra.mxu0 0.0
    %79 = vmatprep.subr.mxu0 0.0
    %80 = vmatpush1.msra.mxu0 0.0
    %81 = vmatprep.subr.mxu0 0.0
    %82 = vmatpush1.msra.mxu0 0.0
    %83 = vmatprep.subr.mxu0 0.0
    %84 = vmatpush1.msra.mxu0 0.0
    %85 = vmatprep.subr.mxu0 0.0
    %86 = vmatpush1.msra.mxu0 0.0
    %87 = vmatprep.subr.mxu0 0.0
    %88 = vmatpush1.msra.mxu0 0.0
    %89 = vmatprep.subr.mxu0 0.0
    %90 = vmatpush1.msra.mxu0 0.0
    %91 = vmatprep.subr.mxu0 0.0
    %92 = vmatpush1.msra.mxu0 0.0
    %93 = vmatprep.subr.mxu0 0.0
    %94 = vmatpush1.msra.mxu0 0.0
    %95 = vmatprep.subr.mxu0 0.0
    %96 = vmatpush1.msra.mxu0 0.0
    %97 = vmatprep.subr.mxu0 0.0
    %98 = vmatpush1.msra.mxu0 0.0
    %99 = vmatprep.mubr.f32.mxu0 0.0
    %100 = vmatmul.mubr.f32.gmra.mrb[0].mxu0 %v16
    %v101 = vpop.f32.mrb[0].mxu0
    %v102 = vadd.f32 %v34, %v101
    %v103 = vpop.f32.mrb[0].mxu0
    %104 = vdwg.mxu0
    %vm105 = vcmask 57344
    %106 = vst.msk [vmem:[#allocation3] sm:$0x1] %vm105, %v102
    // Predicated region
    $region14: #{tpu_custom_call.1} parent=1 // pred_check
      _
    $region15: #{tpu_custom_call.1} parent=1 // pred_check_branch
      %108 = sbr.rel (0) target = $region17
    $region16: #{tpu_custom_call.1} parent=1 // pred_region
      %s110 = ssub.s32 16, 16
      %111 = vsyncadd [#allocation4], %s110
      %s113 = sshll.u32 [#allocation3], 4
      %s114 = int_to_ptr.vmem [resolvable:$true] %s113
      %116 = dma.vmem_to_hbm [thread:$0]  %s114, 16, %s3, [#allocation4]
    $region17: #{tpu_custom_call.1} parent=1 // pred_fallthru
      _
    // Predicated region
    $region18: #{tpu_custom_call.1} parent=1 // pred_check
      _
    $region19: #{tpu_custom_call.1} parent=1 // pred_check_branch
      %118 = sbr.rel (0) target = $region21
    $region20: #{tpu_custom_call.1} parent=1 // pred_region
      %119 = dma.done [#allocation4], 16
    $region21: #{tpu_custom_call.1} parent=1 // pred_fallthru
      _
    %120 = vsyncpa [#allocation4], 1

</llo_original>
